<compile_context>
chip_gen: v7x
topology: tpu7x:2x2x1
jax: 0.10.0
libtpu: 0.0.40
codegen_flags: <defaults>
</compile_context>

<pallas_src>
import functools

import jax
import jax.numpy as jnp
from jax.experimental import pallas as pl
from jax.experimental.pallas import tpu as pltpu

_LANES = 128
_SUBLANES = 8
_CHUNK_ROWS = 1024  # in-kernel slab size: 0.5 MiB per f32 temp, bounds VMEM temps


def _bce_kernel(info_ref, x_ref, t_ref, o_ref, acc_ref, *,
                pos_weight, tiles_per_par, chunk_rows, num_chunks):
    """Weighted-BCE partial-sum kernel.

    info_ref     : SMEM int32[2] = [n // 128, n % 128] (validity thresholds)
    x_ref, t_ref : (tile_rows, 128) VMEM tiles of predictions / targets
    o_ref        : (8, 128) per-parallel-slice partial sums (written at last k)
    acc_ref      : (8, 128) f32 vreg-shaped VMEM accumulator
    """
    k = pl.program_id(1)

    @pl.when(k == 0)
    def _():
        acc_ref[...] = jnp.zeros_like(acc_ref)

    tile_rows = x_ref.shape[0]
    row0 = (pl.program_id(0) * tiles_per_par + k) * tile_rows

    full_rows = info_ref[0]
    rem_lanes = info_ref[1]

    pw = jnp.float32(pos_weight)
    eps = jnp.float32(1e-7)

    def slab(base):
        x = x_ref[pl.ds(base, chunk_rows), :].astype(jnp.float32)
        t = t_ref[pl.ds(base, chunk_rows), :].astype(jnp.float32)
        x = jnp.clip(x, eps, 1.0 - eps)

        # Validity mask from global (row, lane) index — no third HBM stream.
        # Row-space compare avoids int32 overflow of a flat element index.
        r = jax.lax.broadcasted_iota(jnp.int32, (chunk_rows, _LANES), 0)
        c = jax.lax.broadcasted_iota(jnp.int32, (chunk_rows, _LANES), 1)
        grow = row0 + base + r
        valid = (grow < full_rows) | ((grow == full_rows) & (c < rem_lanes))

        # Two-term form kept: the original module admits soft labels.
        # TODO(synk): if targets are guaranteed binary, switch to the single-log
        # form (z = where(t>=.5, x, 1-x); loss = -where(t>=.5, pw, 1)*log(z)) to
        # halve EUP work — matters on v7x where the HBM roofline is ~2x v6e.
        loss = -(pw * t * jnp.log(x) + (1.0 - t) * jnp.log(1.0 - x))
        loss = jnp.where(valid, loss, 0.0)  # select: garbage in masked lanes can't leak

        # Fold into the (8,128) accumulator with VPU adds only (sublane-preserving
        # reshape); the final cross-lane reduce is a tiny XLA sum in the wrapper.
        acc_ref[...] += loss.reshape(chunk_rows // _SUBLANES, _SUBLANES, _LANES).sum(axis=0)

    if num_chunks == 1:
        slab(0)
    else:
        @pl.loop(0, num_chunks)
        def _(g):
            slab(pl.multiple_of(g * chunk_rows, chunk_rows))

    @pl.when(k == pl.num_programs(1) - 1)
    def _():
        o_ref[...] = acc_ref[...]


def custom_bce_loss(inputs, targets, pos_weight=1.0, max_tile_rows=8192):
    """sum(-(pos_weight*t*log(x) + (1-t)*log(1-x))), x clamped to [1e-7, 1-1e-7]."""
    x_flat = inputs.reshape(-1)
    t_flat = targets.reshape(-1)
    n = x_flat.shape[0]

    # Lane-dense (rows, 128) slab.  Rows are only rounded up to a multiple of 8
    # sublanes (pad <= 1023 elements; zero pad/copy when n is 1024-aligned, as in
    # typical NCHW sizes and the shipped 2048-element case).  Tiles no longer
    # force num_tiles*tile_rows padding: the last grid block may be partial and
    # the in-kernel mask zeroes its undefined tail.
    rows_needed = pl.cdiv(n, _LANES)
    rows_padded = ((rows_needed + _SUBLANES - 1) // _SUBLANES) * _SUBLANES

    if rows_padded <= _CHUNK_ROWS:
        tile_rows = rows_padded          # whole problem: one block, one slab
        chunk_rows = rows_padded
    else:
        # Large tiles (multiple of the slab) amortize the ~0.35us/grid-step cost.
        tile_rows = min(max_tile_rows, (rows_padded // _CHUNK_ROWS) * _CHUNK_ROWS)
        chunk_rows = _CHUNK_ROWS
    num_chunks = tile_rows // chunk_rows
    num_tiles = pl.cdiv(rows_padded, tile_rows)

    # Megacore (v7x): split tiles across a leading "parallel" axis with per-core
    # partial sums.  Only used when the tile count splits evenly; harmless
    # grid=(1, ...) on v5e/v6e and for the shipped small size.
    num_par = 2 if (num_tiles >= 2 and num_tiles % 2 == 0) else 1
    tiles_per_par = num_tiles // num_par

    n_padded = rows_padded * _LANES
    pad = n_padded - n
    if pad:
        # Only the ragged tail (bounded by 1023 elements).  Zero-fill is safe:
        # clip precedes the logs and the mask is a select.
        x_flat = jnp.pad(x_flat, (0, pad))
        t_flat = jnp.pad(t_flat, (0, pad))

    x2 = x_flat.reshape(rows_padded, _LANES)
    t2 = t_flat.reshape(rows_padded, _LANES)

    # Scalar prefetch: row / lane validity thresholds (int32-safe).
    info = jnp.array([n // _LANES, n % _LANES], dtype=jnp.int32)

    kernel = functools.partial(
        _bce_kernel,
        pos_weight=float(pos_weight),
        tiles_per_par=tiles_per_par,
        chunk_rows=chunk_rows,
        num_chunks=num_chunks,
    )

    tile_spec = pl.BlockSpec(
        (tile_rows, _LANES), lambda i, k, info: (i * tiles_per_par + k, 0))
    out_spec = pl.BlockSpec(
        (None, _SUBLANES, _LANES), lambda i, k, info: (i, 0, 0))

    # VMEM budget: 2 streams x 2 pipeline buffers x tile + chunk-sized temps +
    # slack.  At the 8192-row default: ~16 MiB buffers + ~4 MiB temps = ~24 MiB,
    # safe on v7x (64 MiB physical) and raises v5e above its 16 MiB default.
    buf_bytes = 2 * 2 * tile_rows * _LANES * 4
    tmp_bytes = 8 * chunk_rows * _LANES * 4
    vmem_limit = int(min(100 << 20, max(16 << 20, buf_bytes + tmp_bytes + (4 << 20))))

    out = pl.pallas_call(
        kernel,
        out_shape=jax.ShapeDtypeStruct((num_par, _SUBLANES, _LANES), jnp.float32),
        grid_spec=pltpu.PrefetchScalarGridSpec(
            num_scalar_prefetch=1,
            grid=(num_par, tiles_per_par),
            in_specs=[tile_spec, tile_spec],
            out_specs=out_spec,
            scratch_shapes=[pltpu.VMEM((_SUBLANES, _LANES), jnp.float32)],
        ),
        compiler_params=pltpu.CompilerParams(
            dimension_semantics=("parallel", "arbitrary"),
            vmem_limit_bytes=vmem_limit,
        ),
        cost_estimate=pl.CostEstimate(
            flops=12 * n,
            transcendentals=2 * n,
            bytes_accessed=8 * n + num_par * _SUBLANES * _LANES * 4,
        ),
    )(info, x2, t2)

    # Tiny cross-lane reduce of the per-core (8,128) partials in XLA.
    return jnp.sum(out)


if __name__ == "__main__":
    key = jax.random.PRNGKey(0)
    k1, k2 = jax.random.split(key)
    # small shapes consistent with a typical SSD-style prediction map
    shape = (2, 4, 16, 16)
    # predictions in (0,1) (e.g. post-sigmoid); targets are 0/1 labels
    x = jax.random.uniform(k1, shape, dtype=jnp.float32, minval=0.0, maxval=1.0)
    t = (jax.random.uniform(k2, shape, dtype=jnp.float32) > 0.5).astype(jnp.float32)

    pos_weight = 2.0
    loss = custom_bce_loss(x, t, pos_weight=pos_weight)
    loss = jax.block_until_ready(loss)

    # pure-JAX reference for sanity
    eps = 1e-7
    xc = jnp.clip(x, eps, 1 - eps)
    ref = jnp.sum(-(pos_weight * t * jnp.log(xc) + (1 - t) * jnp.log(1 - xc)))
    assert jnp.allclose(loss, ref, rtol=1e-5, atol=1e-4), (loss, ref)

    print("KERNEL_OK")
</pallas_src>

<mosaic_0001>
module attributes {stable_mosaic.version = 11 : i64} {
  func.func @_bce_kernel(%arg0: i32, %arg1: i32, %arg2: memref<2xi32, #tpu.memory_space<smem>>, %arg3: memref<16x128xf32, #tpu.memory_space<vmem>>, %arg4: memref<16x128xf32, #tpu.memory_space<vmem>>, %arg5: memref<1x8x128xf32, #tpu.memory_space<vmem>>, %arg6: memref<8x128xf32, #tpu.memory_space<vmem>>) attributes {dimension_semantics = [#tpu.dimension_semantics<parallel>, #tpu.dimension_semantics<arbitrary>], iteration_bounds = array<i64: 1, 1>, scalar_prefetch = 1 : i64, scratch_operands = 1 : i64, tpu.core_type = #tpu.core_type<tc>, window_params = [{transform_indices = @transform_0, window_bounds = array<i64: 16, 128>}, {transform_indices = @transform_1, window_bounds = array<i64: 16, 128>}, {transform_indices = @transform_2, window_bounds = array<i64: 1, 8, 128>}]} {
    %c0_i32 = arith.constant 0 : i32
    %0 = arith.cmpi eq, %arg1, %c0_i32 : i32
    %1 = arith.extui %0 : i1 to i32
    %c0_i32_0 = arith.constant 0 : i32
    %2 = arith.cmpi ne, %1, %c0_i32_0 : i32
    scf.if %2 {
      %cst_20 = arith.constant 0.000000e+00 : f32
      %51 = vector.broadcast %cst_20 : f32 to vector<8x128xf32>
      %c0_21 = arith.constant 0 : index
      %c0_22 = arith.constant 0 : index
      %52 = vector.load %arg6[%c0_21, %c0_22] : memref<8x128xf32, #tpu.memory_space<vmem>>, vector<8x128xf32>
      tpu.vector_store %arg6[%c0_21, %c0_22], %51 {strides = array<i32>} : memref<8x128xf32, #tpu.memory_space<vmem>>, vector<8x128xf32>,
    } else {
    }
    %c1_i32 = arith.constant 1 : i32
    %3 = arith.muli %arg0, %c1_i32 : i32
    %4 = arith.addi %3, %arg1 : i32
    %c16_i32 = arith.constant 16 : i32
    %5 = arith.muli %4, %c16_i32 : i32
    %c0 = arith.constant 0 : index
    %6 = memref.load %arg2[%c0] : memref<2xi32, #tpu.memory_space<smem>>
    %c1 = arith.constant 1 : index
    %7 = memref.load %arg2[%c1] : memref<2xi32, #tpu.memory_space<smem>>
    %c0_1 = arith.constant 0 : index
    %c0_2 = arith.constant 0 : index
    %8 = vector.load %arg3[%c0_1, %c0_2] : memref<16x128xf32, #tpu.memory_space<vmem>>, vector<16x128xf32>
    %c0_3 = arith.constant 0 : index
    %c0_4 = arith.constant 0 : index
    %9 = vector.load %arg4[%c0_3, %c0_4] : memref<16x128xf32, #tpu.memory_space<vmem>>, vector<16x128xf32>
    %cst = arith.constant 1.000000e+00 : f32
    %cst_5 = arith.constant 1.000000e-07 : f32
    %10 = arith.subf %cst, %cst_5 : f32
    %cst_6 = arith.constant 1.000000e-07 : f32
    %11 = vector.broadcast %cst_6 : f32 to vector<16x128xf32>
    %12 = arith.maximumf %11, %8 : vector<16x128xf32>
    %13 = vector.broadcast %10 : f32 to vector<16x128xf32>
    %14 = arith.minimumf %13, %12 : vector<16x128xf32>
    %15 = tpu.iota {dimensions = array<i32: 0>} : vector<16x128xi32>
    %16 = tpu.iota {dimensions = array<i32: 1>} : vector<16x128xi32>
    %c0_i32_7 = arith.constant 0 : i32
    %17 = arith.addi %5, %c0_i32_7 : i32
    %18 = vector.broadcast %17 : i32 to vector<16x128xi32>
    %19 = arith.addi %18, %15 : vector<16x128xi32>
    %20 = vector.broadcast %6 : i32 to vector<16x128xi32>
    %21 = arith.cmpi slt, %19, %20 : vector<16x128xi32>
    %22 = vector.broadcast %6 : i32 to vector<16x128xi32>
    %23 = arith.cmpi eq, %19, %22 : vector<16x128xi32>
    %24 = vector.broadcast %7 : i32 to vector<16x128xi32>
    %25 = arith.cmpi slt, %16, %24 : vector<16x128xi32>
    %26 = arith.andi %23, %25 : vector<16x128xi1>
    %27 = arith.ori %21, %26 : vector<16x128xi1>
    %cst_8 = arith.constant 2.000000e+00 : f32
    %28 = vector.broadcast %cst_8 : f32 to vector<16x128xf32>
    %29 = arith.mulf %28, %9 : vector<16x128xf32>
    %30 = math.log %14 : vector<16x128xf32>
    %31 = arith.mulf %29, %30 : vector<16x128xf32>
    %cst_9 = arith.constant 1.000000e+00 : f32
    %32 = vector.broadcast %cst_9 : f32 to vector<16x128xf32>
    %33 = arith.subf %32, %9 : vector<16x128xf32>
    %cst_10 = arith.constant 1.000000e+00 : f32
    %34 = vector.broadcast %cst_10 : f32 to vector<16x128xf32>
    %35 = arith.subf %34, %14 : vector<16x128xf32>
    %36 = math.log %35 : vector<16x128xf32>
    %37 = arith.mulf %33, %36 : vector<16x128xf32>
    %38 = arith.addf %31, %37 : vector<16x128xf32>
    %cst_11 = arith.constant 0.000000e+00 : f32
    %39 = vector.broadcast %cst_11 : f32 to vector<16x128xf32>
    %40 = arith.subf %39, %38 : vector<16x128xf32>
    %cst_12 = arith.constant 0.000000e+00 : f32
    %41 = vector.broadcast %cst_12 : f32 to vector<16x128xf32>
    %42 = arith.select %27, %40, %41 : vector<16x128xi1>, vector<16x128xf32>
    %c0_13 = arith.constant 0 : index
    %c0_14 = arith.constant 0 : index
    %43 = vector.load %arg6[%c0_13, %c0_14] : memref<8x128xf32, #tpu.memory_space<vmem>>, vector<8x128xf32>
    %44 = vector.shape_cast %42 : vector<16x128xf32> to vector<2x8x128xf32>
    %cst_15 = arith.constant dense<0.000000e+00> : vector<8x128xf32>
    %45 = vector.multi_reduction <add>, %44, %cst_15 [0] : vector<2x8x128xf32> to vector<8x128xf32>
    %46 = arith.addf %43, %45 : vector<8x128xf32>
    %c0_16 = arith.constant 0 : index
    %c0_17 = arith.constant 0 : index
    %47 = vector.load %arg6[%c0_16, %c0_17] : memref<8x128xf32, #tpu.memory_space<vmem>>, vector<8x128xf32>
    tpu.vector_store %arg6[%c0_16, %c0_17], %46 {strides = array<i32>} : memref<8x128xf32, #tpu.memory_space<vmem>>, vector<8x128xf32>,
    %c0_i32_18 = arith.constant 0 : i32
    %48 = arith.cmpi eq, %arg1, %c0_i32_18 : i32
    %49 = arith.extui %48 : i1 to i32
    %c0_i32_19 = arith.constant 0 : i32
    %50 = arith.cmpi ne, %49, %c0_i32_19 : i32
    scf.if %50 {
      %c0_20 = arith.constant 0 : index
      %c0_21 = arith.constant 0 : index
      %51 = vector.load %arg6[%c0_20, %c0_21] : memref<8x128xf32, #tpu.memory_space<vmem>>, vector<8x128xf32>
      %c0_22 = arith.constant 0 : index
      %c0_23 = arith.constant 0 : index
      %c0_24 = arith.constant 0 : index
      %52 = vector.load %arg5[%c0_22, %c0_23, %c0_24] : memref<1x8x128xf32, #tpu.memory_space<vmem>>, vector<1x8x128xf32>
      %53 = vector.shape_cast %52 : vector<1x8x128xf32> to vector<8x128xf32>
      %54 = vector.shape_cast %51 : vector<8x128xf32> to vector<1x8x128xf32>
      tpu.vector_store %arg5[%c0_22, %c0_23, %c0_24], %54 {strides = array<i32>} : memref<1x8x128xf32, #tpu.memory_space<vmem>>, vector<1x8x128xf32>,
    } else {
    }
    return
  }
  func.func @transform_0(%arg0: i32, %arg1: i32, %arg2: memref<2xi32, #tpu.memory_space<smem>>) -> (i32, i32) {
    %c1_i32 = arith.constant 1 : i32
    %0 = arith.muli %arg0, %c1_i32 : i32
    %1 = arith.addi %0, %arg1 : i32
    %c0_i32 = arith.constant 0 : i32
    %c0_i32_0 = arith.constant 0 : i32
    return %1, %c0_i32 : i32, i32
  }
  func.func @transform_1(%arg0: i32, %arg1: i32, %arg2: memref<2xi32, #tpu.memory_space<smem>>) -> (i32, i32) {
    %c1_i32 = arith.constant 1 : i32
    %0 = arith.muli %arg0, %c1_i32 : i32
    %1 = arith.addi %0, %arg1 : i32
    %c0_i32 = arith.constant 0 : i32
    %c0_i32_0 = arith.constant 0 : i32
    return %1, %c0_i32 : i32, i32
  }
  func.func @transform_2(%arg0: i32, %arg1: i32, %arg2: memref<2xi32, #tpu.memory_space<smem>>) -> (i32, i32, i32) {
    %c0_i32 = arith.constant 0 : i32
    %c0_i32_0 = arith.constant 0 : i32
    %c0_i32_1 = arith.constant 0 : i32
    return %arg0, %c0_i32, %c0_i32_0 : i32, i32, i32
  }
}

</mosaic_0001>

<llo_original>
// kernel: tpu_custom_call.1
$region0: #{tpu_custom_call.1}
  #allocation0 [shape = 'u32[]', space=smem, size = 0x4, offset = 0x4, fixed_abs, tag = 'smem constant byte address 0x4 - core index']
  #allocation1 [shape = 'u32[144,128]{1,0:T(1,128)}', space=vmem, size = 0x12000, scoped, tag = 'internal scratch']
  #allocation2 [shape = 'f32[8,128]{1,0:T(8,128)}', space=vmem, size = 0x1000, scoped, tag = 'scratch operand']
  #allocation3 [shape = 's32[1]{0}', space=sflag, size = 0x4, scoped, tag = 'scoped memory for tpu_custom_call.1']
  #allocation4 [shape = 'u8[512]{0}', space=smem, size = 0x200, scoped, tag = 'prefetched SMEM operand 0']
  %s0 = inlined_call_operand.hbm [shape: s32[2], index: 0, kind: input, shape index: {}]
  %s1 = inlined_call_operand.hbm [shape: f32[16,128], index: 1, kind: input, shape index: {}]
  %s2 = inlined_call_operand.hbm [shape: f32[16,128], index: 2, kind: input, shape index: {}]
  %s3 = inlined_call_operand.hbm [shape: f32[1,8,128], index: 3, kind: output, shape index: {}]
  %s4 = sld [smem:[#allocation0]]
  $region34: #{tpu_custom_call.1} parent=0
    _
  %s6 = ssub.s32 1, %s4
  %s7 = scalar_select 0, %s6, %s4
  %9 = dma.hbm_to_smem %s0, 16, [#allocation4], [#allocation3]
  %10 = dma.done [#allocation3], 16
  %11 = sfence
  $region1: #{tpu_custom_call.1} parent=0
    #allocation5 [shape = 'u8[8192]{0}', space=vmem, size = 0x2000, scoped, tag = 'input window, operand 1, single buffered']
    #allocation6 [shape = 's32[1]{0}', space=sflag, size = 0x4, scoped, tag = 'scoped memory for tpu_custom_call.1']
    #allocation7 [shape = 's32[1]{0}', space=sflag, size = 0x4, scoped, tag = 'scoped memory for tpu_custom_call.1']
    #allocation8 [shape = 'u8[8192]{0}', space=vmem, size = 0x2000, scoped, tag = 'input window, operand 2, single buffered']
    #allocation9 [shape = 's32[1]{0}', space=sflag, size = 0x4, scoped, tag = 'scoped memory for tpu_custom_call.1']
    #allocation10 [shape = 'u8[4096]{0}', space=vmem, size = 0x1000, scoped, tag = 'output window, operand 0, single buffered']
    %12 = vsyncpa [#allocation6], 0
    %13 = vsyncpa [#allocation9], 0
    %14 = vsyncpa [#allocation7], 0
    // Predicated region
    $region2: #{tpu_custom_call.1} parent=1 // pred_check
      _
    $region3: #{tpu_custom_call.1} parent=1 // pred_check_branch
      %16 = sbr.rel (0) target = $region5
    $region4: #{tpu_custom_call.1} parent=1 // pred_region
      %s17 = sadd.s32 0, 0
      %s18 = smul.u32 2, %s17
      %s20 = ssub.s32 256, 256
      %21 = vsyncadd [#allocation6], %s20
      %s22 = smul.addr %s18, 128
      %s23 = scalar_lea.hbm %s1, %s22
      %s24 = sshll.u32 [#allocation5], 4
      %s25 = int_to_ptr.vmem [resolvable:$true] %s24
      %30 = dma.hbm_to_vmem [thread:$0]  %s23, 256, %s25, [#allocation6], 128, 128, 8
    $region5: #{tpu_custom_call.1} parent=1 // pred_fallthru
      _
    // Predicated region
    $region6: #{tpu_custom_call.1} parent=1 // pred_check
      _
    $region7: #{tpu_custom_call.1} parent=1 // pred_check_branch
      %32 = sbr.rel (0) target = $region9
    $region8: #{tpu_custom_call.1} parent=1 // pred_region
      %s33 = sadd.s32 0, 0
      %s34 = smul.u32 2, %s33
      %s36 = ssub.s32 256, 256
      %37 = vsyncadd [#allocation9], %s36
      %s38 = smul.addr %s34, 128
      %s39 = scalar_lea.hbm %s2, %s38
      %s40 = sshll.u32 [#allocation8], 4
      %s41 = int_to_ptr.vmem [resolvable:$true] %s40
      %46 = dma.hbm_to_vmem [thread:$0]  %s39, 256, %s41, [#allocation9], 128, 128, 8
    $region9: #{tpu_custom_call.1} parent=1 // pred_fallthru
      _
    // Predicated region
    $region10: #{tpu_custom_call.1} parent=1 // pred_check
      _
    $region11: #{tpu_custom_call.1} parent=1 // pred_check_branch
      %48 = sbr.rel (0) target = $region13
    $region12: #{tpu_custom_call.1} parent=1 // pred_region
      %49 = dma.done [#allocation6], 256
    $region13: #{tpu_custom_call.1} parent=1 // pred_fallthru
      _
    // Predicated region
    $region14: #{tpu_custom_call.1} parent=1 // pred_check
      _
    $region15: #{tpu_custom_call.1} parent=1 // pred_check_branch
      %51 = sbr.rel (0) target = $region17
    $region16: #{tpu_custom_call.1} parent=1 // pred_region
      %52 = dma.done [#allocation9], 256
    $region17: #{tpu_custom_call.1} parent=1 // pred_fallthru
      _
    %s53 = sadd.s32 0, 0
    %s54 = smul.u32 2, %s53
    %s55 = sadd.s32 0, 0
    %s56 = smul.u32 2, %s55
    %p57 = scmp.eq.s32.totalorder 0, 0
    // Predicated region
    $region18: #{tpu_custom_call.1} parent=1 // pred_check
      %p58 = pneg %p57
    $region19: #{tpu_custom_call.1} parent=1 // pred_check_branch
      %60 = sbr.rel (%p58) target = $region21
    $region20: #{tpu_custom_call.1} parent=1 // pred_region
      %61 = vst [vmem:[#allocation2] sm:$0xff] 0.0
    $region21: #{tpu_custom_call.1} parent=1 // pred_fallthru
      _
    %s62 = sadd.s32 0, 0
    %s63 = smul.u32 %s62, 16
    %s64 = sld [smem:[#allocation4]]
    %s65 = sld [smem:[#allocation4 + $0x1]]
    %v66 = vld [vmem:[#allocation5] sm:$0xff]
    %v67 = vld [vmem:[#allocation5 + $0x8] sm:$0xff]
    %v68 = vld [vmem:[#allocation8] sm:$0xff]
    %v69 = vld [vmem:[#allocation8 + $0x8] sm:$0xff]
    %v70 = vmax.f32 %v66, 1e-07
    %v71 = vmax.f32 %v67, 1e-07
    %v72 = vmin.f32 %v70, 0.9999999
    %v73 = vmin.f32 %v71, 0.9999999
    %v74 = vlaneseq
    %v75 = vshrl.u32 %v74, 7
    %v76 = vadd.s32 %v75, 8
    %v77 = vlaneseq
    %v78 = vand.u32 %v77, 127
    %v79 = vstv %s63
    %v80 = vadd.s32 %v79, %v75
    %v81 = vadd.s32 %v79, %v76
    %v82 = vstv %s64
    %vm83 = vcmp.lt.s32.totalorder %v80, %v82
    %vm84 = vcmp.lt.s32.totalorder %v81, %v82
    %vm85 = vcmp.eq.s32.totalorder %v80, %v82
    %vm86 = vcmp.eq.s32.totalorder %v81, %v82
    %v87 = vstv %s65
    %vm88 = vcmp.lt.s32.totalorder %v78, %v87
    %vm89 = vmand %vm85, %vm88
    %vm90 = vmand %vm86, %vm88
    %vm91 = vmor %vm83, %vm89
    %vm92 = vmor %vm84, %vm90
    %v93 = vmul.f32 %v68, 2.0
    %v94 = vmul.f32 %v69, 2.0
    %v95 = vlog2.pop %v72
    %v96 = vmul.f32 %v95, 0.6931472
    %v97 = vlog2.pop %v73
    %v98 = vmul.f32 %v97, 0.6931472
    %v99 = vmul.f32 %v93, %v96
    %v100 = vmul.f32 %v94, %v98
    %v101 = vsub.f32 1.0, %v68
    %v102 = vsub.f32 1.0, %v69
    %v103 = vsub.f32 1.0, %v72
    %v104 = vsub.f32 1.0, %v73
    %v105 = vlog2.pop %v103
    %v106 = vmul.f32 %v105, 0.6931472
    %v107 = vlog2.pop %v104
    %v108 = vmul.f32 %v107, 0.6931472
    %v109 = vmul.f32 %v101, %v106
    %v110 = vmul.f32 %v102, %v108
    %v111 = vadd.f32 %v99, %v109
    %v112 = vadd.f32 %v100, %v110
    %v113 = vsub.f32 0.0, %v111
    %v114 = vsub.f32 0.0, %v112
    %v115 = vsel %vm91, %v113, 0.0
    %v116 = vsel %vm92, %v114, 0.0
    %v117 = vld [vmem:[#allocation2] sm:$0xff]
    %v118 = vadd.f32 %v115, %v116
    %v119 = vadd.f32 %v117, %v118
    %120 = vst [vmem:[#allocation2] sm:$0xff] %v119
    // Predicated region
    $region22: #{tpu_custom_call.1} parent=1 // pred_check
      %p121 = pneg %p57
    $region23: #{tpu_custom_call.1} parent=1 // pred_check_branch
      %123 = sbr.rel (%p121) target = $region25
    $region24: #{tpu_custom_call.1} parent=1 // pred_region
      %v124 = vld [vmem:[#allocation2] sm:$0xff]
      %125 = vst [vmem:[#allocation10] sm:$0xff] %v124
    $region25: #{tpu_custom_call.1} parent=1 // pred_fallthru
      _
    // Predicated region
    $region26: #{tpu_custom_call.1} parent=1 // pred_check
      _
    $region27: #{tpu_custom_call.1} parent=1 // pred_check_branch
      %127 = sbr.rel (0) target = $region29
    $region28: #{tpu_custom_call.1} parent=1 // pred_region
      %s129 = ssub.s32 128, 128
      %130 = vsyncadd [#allocation7], %s129
      %s132 = sshll.u32 [#allocation10], 4
      %s133 = int_to_ptr.vmem [resolvable:$true] %s132
      %135 = dma.vmem_to_hbm [thread:$0]  %s133, 128, %s3, [#allocation7]
    $region29: #{tpu_custom_call.1} parent=1 // pred_fallthru
      _
    // Predicated region
    $region30: #{tpu_custom_call.1} parent=1 // pred_check
      _
    $region31: #{tpu_custom_call.1} parent=1 // pred_check_branch
      %137 = sbr.rel (0) target = $region33
    $region32: #{tpu_custom_call.1} parent=1 // pred_region
      %138 = dma.done [#allocation7], 128
    $region33: #{tpu_custom_call.1} parent=1 // pred_fallthru
      _
    %139 = vsyncpa [#allocation6], 1
    %140 = vsyncpa [#allocation9], 1
    %141 = vsyncpa [#allocation7], 1

</llo_original>
